<compile_context>
chip_gen: v6e
topology: v6e:2x2x1
jax: 0.10.0
libtpu: 0.0.40
codegen_flags: <defaults>
</compile_context>

<pallas_src>
import functools

import jax
import jax.numpy as jnp
from jax.experimental import pallas as pl
from jax.experimental.pallas import tpu as pltpu


def _round_up(x, m):
    return ((x + m - 1) // m) * m


def _cdiv(a, b):
    return -(-a // b)


def _tpu_vmem_bytes():
    """Per-TensorCore VMEM capacity; conservative fallback (v7x = 64 MiB) if the query fails."""
    try:
        return int(pltpu.get_tpu_info().vmem_capacity_bytes)
    except Exception:  # pragma: no cover - query unavailable (e.g. interpret mode)
        return 64 << 20


def _location_layer_kernel(x_ref, w_ref, o_ref):
    """One fused matmul per grid step.

    x_ref: (Rt, 2K)  bf16  im2col rows (batch*time flattened)
    w_ref: (2K, A)   bf16  fused conv (x) linear weights
    o_ref: (Rt, A)   out_dtype
    """
    o_ref[...] = jnp.dot(
        x_ref[...], w_ref[...], preferred_element_type=jnp.float32
    ).astype(o_ref.dtype)


def init_params(key, n_filters, kernel_size, attention_dim):
    """Deterministic synthetic Conv1d / Linear weights + the offline-fused kernel weight."""
    kc, kl = jax.random.split(key)
    w_conv = jax.random.normal(kc, (n_filters, 2, kernel_size), jnp.float32) / jnp.sqrt(
        2.0 * kernel_size)                               # PyTorch Conv1d weight layout (F, 2, K)
    w_lin = jax.random.normal(kl, (attention_dim, n_filters), jnp.float32) / jnp.sqrt(
        float(n_filters))                                # PyTorch Linear weight layout (A, F)
    # fused[k, c, a] = sum_f w_conv[f, c, k] * w_lin[a, f]
    w_fused = jnp.einsum("fck,af->kca", w_conv, w_lin)   # (K, 2, A)
    return {
        "kernel_size": kernel_size,
        "w_conv": w_conv,
        "w_lin": w_lin,
        "w_fused": w_fused.astype(jnp.bfloat16),
    }


def _choose_row_tile(total_rows, A, out_bytes):
    """Pick the row tile Rt and number of grid steps from the VMEM budget."""
    vmem_cap = _tpu_vmem_bytes()
    a_pad = _round_up(max(A, 1), 128)
    # Per-row VMEM bytes: input lane-padded 2K->128 (bf16, x2 buffers)
    # + output (x2 buffers) + f32 matmul temporary.
    per_row = 128 * 2 * 2 + a_pad * out_bytes * 2 + a_pad * 4
    budget = min(vmem_cap // 4, 24 << 20)
    rt_cap = max(16, (budget // per_row) // 16 * 16)

    n_steps = max(1, _cdiv(total_rows, rt_cap))
    if total_rows >= 32:
        n_steps = max(n_steps, 2)          # keep both v7x TensorCores busy on small calls
    rt = _round_up(_cdiv(total_rows, n_steps), 16)   # mult of 16: bf16 (16,128) & f32 (8,128)
    return rt, n_steps, vmem_cap, a_pad


def location_layer_forward(attention_weights_cat, params, *, out_dtype=jnp.float32):
    """attention_weights_cat: (B, 2, T) f32  ->  (B, T, attention_dim) out_dtype."""
    w_fused = params["w_fused"]                          # (K, 2, A) bf16
    K, _, A = w_fused.shape
    p = (K - 1) // 2

    B, C, T = attention_weights_cat.shape
    assert C == 2, "LocationLayer expects 2 input channels (attention_weights_cat)"

    out_bytes = jnp.dtype(out_dtype).itemsize
    total_rows = B * T
    rt, n_steps, vmem_cap, a_pad = _choose_row_tile(total_rows, A, out_bytes)
    rows_pad = rt * n_steps

    # ---- wrapper-side im2col (single fused XLA pass under jit) ----------------------------
    x = jnp.transpose(attention_weights_cat, (0, 2, 1))                 # (B, T, 2)
    xpad = jnp.pad(x, ((0, 0), (p, p), (0, 0)))                         # (B, T+2p, 2)
    x_unf = jnp.concatenate([xpad[:, k:k + T, :] for k in range(K)], axis=-1)   # (B, T, 2K)
    x_unf = x_unf.reshape(total_rows, 2 * K).astype(jnp.bfloat16)
    x_unf = jnp.pad(x_unf, ((0, rows_pad - total_rows), (0, 0)))        # (rows_pad, 2K)

    w2 = w_fused.reshape(2 * K, A)                                      # (2K, A) bf16

    # ---- explicit VMEM budget for the chosen blocks ----------------------------------------
    in_blk = rt * 128 * 2                  # bf16 input block, lane-padded 2K -> 128
    out_blk = rt * a_pad * out_bytes
    acc_tmp = rt * a_pad * 4               # f32 matmul result before the store cast
    w_blk = 16 * a_pad * 2                 # 2K sublanes pad to 16
    needed = 2 * in_blk + 2 * out_blk + acc_tmp + 2 * w_blk + (4 << 20)
    vmem_limit = int(min(max(needed, 32 << 20), max(vmem_cap - (8 << 20), 32 << 20)))

    cost = pl.CostEstimate(
        flops=2 * rows_pad * (2 * K) * A,
        transcendentals=0,
        bytes_accessed=rows_pad * (2 * K) * 2 + (2 * K) * A * 2 + rows_pad * A * out_bytes,
    )

    out = pl.pallas_call(
        _location_layer_kernel,
        out_shape=jax.ShapeDtypeStruct((rows_pad, A), out_dtype),
        grid_spec=pltpu.PrefetchScalarGridSpec(
            num_scalar_prefetch=0,
            grid=(n_steps,),
            in_specs=[
                pl.BlockSpec((rt, 2 * K), lambda r: (r, 0)),   # im2col rows
                pl.BlockSpec((2 * K, A), lambda r: (0, 0)),    # fused weights (grid-invariant)
            ],
            out_specs=pl.BlockSpec((rt, A), lambda r: (r, 0)), # lane-dense when A % 128 == 0
        ),
        compiler_params=pltpu.CompilerParams(
            dimension_semantics=("parallel",),
            vmem_limit_bytes=vmem_limit,
        ),
        cost_estimate=cost,
    )(x_unf, w2)

    return out[:total_rows].reshape(B, T, A)


def reference_forward(x_cat, params):
    """Pure-JAX f32 reference matching the PyTorch forward exactly."""
    W = params["w_conv"]
    Wl = params["w_lin"]
    K = params["kernel_size"]
    p = (K - 1) // 2
    y = jax.lax.conv_general_dilated(x_cat, W, (1,), [(p, p)],
                                     dimension_numbers=("NCH", "OIH", "NCH"))  # (B, F, T)
    y = jnp.transpose(y, (0, 2, 1))                      # (B, T, F)  == .transpose(1, 2)
    return y @ Wl.T                                      # (B, T, A)  bias-free Linear


def matched_reference(x_cat, params):
    """Same math as the kernel (bf16-rounded operands, f32 accumulation), pure elementwise f32."""
    K = params["kernel_size"]
    p = (K - 1) // 2
    wf = params["w_fused"].astype(jnp.float32)           # (K, 2, A)
    x = jnp.transpose(x_cat, (0, 2, 1)).astype(jnp.bfloat16).astype(jnp.float32)
    B, T, _ = x.shape
    xpad = jnp.pad(x, ((0, 0), (p, p), (0, 0)))
    out = jnp.zeros((B, T, wf.shape[-1]), jnp.float32)
    for k in range(K):
        out = out + (xpad[:, k:k + T, 0:1] * wf[k, 0, :]
                     + xpad[:, k:k + T, 1:2] * wf[k, 1, :])
    return out


if __name__ == "__main__":
    # Small shapes consistent with the module: attention_weights_cat is (batch, 2, seq).
    B, T = 2, 64
    n_filters, kernel_size, attention_dim = 32, 7, 128

    key = jax.random.PRNGKey(0)
    kx, kp = jax.random.split(key)
    x_cat = jax.random.normal(kx, (B, 2, T), jnp.float32)
    params = init_params(kp, n_filters, kernel_size, attention_dim)

    fwd = jax.jit(functools.partial(location_layer_forward, params=params))
    out = jax.block_until_ready(fwd(x_cat))
    assert out.shape == (B, T, attention_dim), out.shape
    assert out.dtype == jnp.float32, out.dtype

    # Tight check: kernel mechanics vs identical bf16-rounded math in f32.
    ref_bits = matched_reference(x_cat, params)
    err_bits = float(jnp.max(jnp.abs(out - ref_bits)))
    assert err_bits < 2e-3, err_bits

    # Semantic check: PyTorch-path full-f32 reference (loose tolerance covers bf16 quantization).
    ref_f32 = reference_forward(x_cat, params)
    err_f32 = float(jnp.max(jnp.abs(out - ref_f32)))
    assert err_f32 < 1e-1, err_f32

    # Optional low-writeback path for v5e/v6e: bf16 output (halves the dominant HBM write).
    out_bf16 = jax.block_until_ready(
        location_layer_forward(x_cat, params, out_dtype=jnp.bfloat16))
    err_bf16 = float(jnp.max(jnp.abs(out_bf16.astype(jnp.float32) - ref_f32)))
    assert out_bf16.dtype == jnp.bfloat16
    assert err_bf16 < 1.5e-1, err_bf16

    print("KERNEL_OK")
</pallas_src>

<mosaic_0001>
module attributes {stable_mosaic.version = 11 : i64} {
  func.func @_location_layer_kernel(%arg0: i32, %arg1: memref<64x14xbf16, #tpu.memory_space<vmem>>, %arg2: memref<14x128xbf16, #tpu.memory_space<vmem>>, %arg3: memref<64x128xf32, #tpu.memory_space<vmem>>) attributes {dimension_semantics = [#tpu.dimension_semantics<parallel>], iteration_bounds = array<i64: 2>, scalar_prefetch = 0 : i64, scratch_operands = 0 : i64, tpu.core_type = #tpu.core_type<tc>, window_params = [{transform_indices = @transform_0, window_bounds = array<i64: 64, 14>}, {pipeline_mode = #tpu.pipeline_mode<synchronous>, transform_indices = @transform_1, window_bounds = array<i64: 14, 128>}, {transform_indices = @transform_2, window_bounds = array<i64: 64, 128>}]} {
    %c0 = arith.constant 0 : index
    %c0_0 = arith.constant 0 : index
    %0 = vector.load %arg1[%c0, %c0_0] : memref<64x14xbf16, #tpu.memory_space<vmem>>, vector<64x14xbf16>
    %c0_1 = arith.constant 0 : index
    %c0_2 = arith.constant 0 : index
    %1 = vector.load %arg2[%c0_1, %c0_2] : memref<14x128xbf16, #tpu.memory_space<vmem>>, vector<14x128xbf16>
    %cst = arith.constant dense<0.000000e+00> : vector<64x128xf32>
    %2 = tpu.matmul %0, %1, %cst {dimension_numbers = #tpu.dot_dimension_numbers<[1], [0], [0], [1], [0, 0, 1, 1], [], []>} : vector<64x14xbf16>, vector<14x128xbf16>, vector<64x128xf32> -> vector<64x128xf32>
    %c0_3 = arith.constant 0 : index
    %c0_4 = arith.constant 0 : index
    %3 = vector.load %arg3[%c0_3, %c0_4] : memref<64x128xf32, #tpu.memory_space<vmem>>, vector<64x128xf32>
    tpu.vector_store %arg3[%c0_3, %c0_4], %2 {strides = array<i32>} : memref<64x128xf32, #tpu.memory_space<vmem>>, vector<64x128xf32>,
    return
  }
  func.func @transform_0(%arg0: i32) -> (i32, i32) {
    %c0_i32 = arith.constant 0 : i32
    %c0_i32_0 = arith.constant 0 : i32
    return %arg0, %c0_i32 : i32, i32
  }
  func.func @transform_1(%arg0: i32) -> (i32, i32) {
    %c0_i32 = arith.constant 0 : i32
    %c0_i32_0 = arith.constant 0 : i32
    %c0_i32_1 = arith.constant 0 : i32
    return %c0_i32, %c0_i32_0 : i32, i32
  }
  func.func @transform_2(%arg0: i32) -> (i32, i32) {
    %c0_i32 = arith.constant 0 : i32
    %c0_i32_0 = arith.constant 0 : i32
    return %arg0, %c0_i32 : i32, i32
  }
}

</mosaic_0001>

<llo_original>
// kernel: location_layer_forward.1
$region0: #{location_layer_forward.1}
  #allocation0 [shape = 'u32[]', space=smem, size = 0x4, offset = 0x4, fixed_abs, tag = 'smem constant byte address 0x4 - core index']
  #allocation1 [shape = 'u32[144,128]{1,0:T(1,128)}', space=vmem, size = 0x12000, scoped, tag = 'internal scratch']
  %s0 = inlined_call_operand.vmem [shape: bf16[128,14], index: 0, kind: input, shape index: {}]
  %s1 = inlined_call_operand.vmem [shape: bf16[14,128], index: 1, kind: input, shape index: {}]
  %s2 = inlined_call_operand.hbm [shape: f32[128,128], index: 2, kind: output, shape index: {}]
  %s3 = sld [smem:[#allocation0]]
  $region41: #{location_layer_forward.1} parent=0
    _
  %s5 = ssub.s32 1, %s3
  %s6 = scalar_select 0, %s5, %s3
  $region1: #{location_layer_forward.1} parent=0
    #allocation2 [shape = 'u8[65536]{0}', space=vmem, size = 0x10000, scoped, tag = 'output window, operand 0']
    #allocation3 [shape = 's32[2]{0}', space=sflag, size = 0x8, scoped, tag = 'scoped memory for location_layer_forward.1']
    %7 = vsyncpa [#allocation3], 0
    %s8 = scalar_lea.sflag [#allocation3], 1
    %9 = vsyncpa %s8, 0
    loop: start=0, step=1, limit=4
    $region2: #{location_layer_forward.1} parent=1 // loop_pre_header
      _
    $region3: #{location_layer_forward.1} parent=1 // loop_header
      %s11 = sphi 0, %s15
      %p12 = scmp.ge.s32.totalorder %s11, 4
      %s21 = sphi 0, %s23
      %s24 = sphi 0, %s21
      %s25 = sphi 0, %s24
      %s41 = sphi 0, %s25
      %s45 = sphi 0, %s45
      %s47 = sphi 0, %s45
      %s48 = sphi 0, %s47
      %s62 = sphi 0, %s48
      %s68 = sphi 0, %s70
      %s71 = sphi 0, %s68
      %s72 = sphi 0, %s71
      %s88 = sphi 0, %s72
    $region4: #{location_layer_forward.1} parent=1 // loop_header_branch
      %14 = sbr.rel (%p12) target = $region8
    $region5: #{location_layer_forward.1} parent=1 // loop_body
      %s16 = ssub.s32 %s11, 1
      %s17 = ssub.s32 %s11, 2
      %s18 = sadd.s32 %s11, 1
      %s19 = ssub.s32 %s11, %s18
      %p20 = scmp.eq.s32.totalorder %s19, 0
      %s22 = sadd.s32 %s21, 1
      %s23 = scalar_select %p20, %s21, %s22
      %p26 = pneg %p20
      %p27 = scmp.eq.s32.totalorder %s11, 1
      %p28 = por %p26, %p27
      %p29 = scmp.ne.s32.totalorder %s21, %s24
      %p30 = scmp.eq.s32.totalorder %s11, 0
      %p31 = por %p29, %p30
      %p32 = scmp.ne.s32.totalorder %s21, %s24
      %p33 = scmp.eq.s32.totalorder %s16, 1
      %p34 = por %p32, %p33
      %p35 = scmp.ne.s32.totalorder %s24, %s25
      %p36 = scmp.eq.s32.totalorder %s16, 0
      %p37 = por %p35, %p36
      %p38 = scmp.ne.s32.totalorder %s24, %s25
      %p39 = scmp.eq.s32.totalorder %s17, 1
      %p40 = por %p38, %p39
      %p42 = scmp.ne.s32.totalorder %s25, %s41
      %p43 = scmp.eq.s32.totalorder %s17, 0
      %p44 = por %p42, %p43
      %s46 = sadd.s32 %s45, 1
      %p49 = scmp.eq.s32.totalorder %s11, 1
      %p50 = scmp.ne.s32.totalorder %s45, %s47
      %p51 = scmp.eq.s32.totalorder %s11, 0
      %p52 = por %p50, %p51
      %p53 = scmp.ne.s32.totalorder %s45, %s47
      %p54 = scmp.eq.s32.totalorder %s16, 1
      %p55 = por %p53, %p54
      %p56 = scmp.ne.s32.totalorder %s47, %s48
      %p57 = scmp.eq.s32.totalorder %s16, 0
      %p58 = por %p56, %p57
      %p59 = scmp.ne.s32.totalorder %s47, %s48
      %p60 = scmp.eq.s32.totalorder %s17, 1
      %p61 = por %p59, %p60
      %p63 = scmp.ne.s32.totalorder %s48, %s62
      %p64 = scmp.eq.s32.totalorder %s17, 0
      %p65 = por %p63, %p64
      %s66 = ssub.s32 %s11, %s18
      %p67 = scmp.eq.s32.totalorder %s66, 0
      %s69 = sadd.s32 %s68, 1
      %s70 = scalar_select %p67, %s68, %s69
      %p73 = pneg %p67
      %p74 = scmp.eq.s32.totalorder %s11, 1
      %p75 = por %p73, %p74
      %p76 = scmp.ne.s32.totalorder %s68, %s71
      %p77 = scmp.eq.s32.totalorder %s11, 0
      %p78 = por %p76, %p77
      %p79 = scmp.ne.s32.totalorder %s68, %s71
      %p80 = scmp.eq.s32.totalorder %s16, 1
      %p81 = por %p79, %p80
      %p82 = scmp.ne.s32.totalorder %s71, %s72
      %p83 = scmp.eq.s32.totalorder %s16, 0
      %p84 = por %p82, %p83
      %p85 = scmp.ne.s32.totalorder %s71, %s72
      %p86 = scmp.eq.s32.totalorder %s17, 1
      %p87 = por %p85, %p86
      %p89 = scmp.ne.s32.totalorder %s72, %s88
      %p90 = scmp.eq.s32.totalorder %s17, 0
      %p91 = por %p89, %p90
      %p92 = scmp.le.s32.totalorder 1, %s11
      %p93 = scmp.lt.s32.totalorder %s11, 3
      %p94 = pnand %p92, %p93
      %p95 = pneg %p94
      // Predicated region
      $region9: #{location_layer_forward.1} parent=5 // pred_check
        _
      $region10: #{location_layer_forward.1} parent=5 // pred_check_branch
        %97 = sbr.rel (%p94) target = $region12
      $region11: #{location_layer_forward.1} parent=5 // pred_region
        %s98 = ssub.s32 %s11, 1
        // Predicated region
        $region13: #{location_layer_forward.1} parent=11 // pred_check
          %p99 = pneg %p58
        $region14: #{location_layer_forward.1} parent=11 // pred_check_branch
          %101 = sbr.rel (%p99) target = $region16
        $region15: #{location_layer_forward.1} parent=11 // pred_region
          _
        $region16: #{location_layer_forward.1} parent=11 // pred_fallthru
          _
      $region12: #{location_layer_forward.1} parent=5 // pred_fallthru
        _
      %p102 = scmp.lt.s32.totalorder %s11, 2
      // Predicated region
      $region17: #{location_layer_forward.1} parent=5 // pred_check
        %p103 = pneg %p102
      $region18: #{location_layer_forward.1} parent=5 // pred_check_branch
        %105 = sbr.rel (%p103) target = $region20
      $region19: #{location_layer_forward.1} parent=5 // pred_region
        // Predicated region
        $region21: #{location_layer_forward.1} parent=19 // pred_check
          %p106 = pneg %p31
        $region22: #{location_layer_forward.1} parent=19 // pred_check_branch
          %108 = sbr.rel (%p106) target = $region24
        $region23: #{location_layer_forward.1} parent=19 // pred_region
          %s109 = smul.u32 8, %s11
          %p110 = scmp.lt.s32.totalorder %s109, 15
          %s111 = scalar_select %p110, %s109, 15
          %s112 = smul.addr %s111, 4
          %s113 = scalar_lea.vmem %s0, %s112
          %s114 = smul.u32 8, %s11
        $region24: #{location_layer_forward.1} parent=19 // pred_fallthru
          _
      $region20: #{location_layer_forward.1} parent=5 // pred_fallthru
        _
      %p115 = scmp.le.s32.totalorder 1, %s11
      %p116 = scmp.lt.s32.totalorder %s11, 3
      %p117 = pnand %p115, %p116
      %p118 = pneg %p117
      // Predicated region
      $region25: #{location_layer_forward.1} parent=5 // pred_check
        _
      $region26: #{location_layer_forward.1} parent=5 // pred_check_branch
        %120 = sbr.rel (%p117) target = $region28
      $region27: #{location_layer_forward.1} parent=5 // pred_region
        %s121 = ssub.s32 %s11, 1
        %s122 = smul.u32 8, %s16
        %p123 = scmp.lt.s32.totalorder %s122, 15
        %s124 = scalar_select %p123, %s122, 15
        %s125 = smul.addr %s124, 4
        %s126 = scalar_lea.vmem %s0, %s125
        %p127 = pneg %p37
        %p128 = pneg %p34
        %p129 = pneg %p58
        %p130 = pneg %p55
        %p131 = pneg %p84
        %p132 = pneg %p81
        %s133 = sand.u32 %s71, 1
        %s134 = scalar_lea.sflag [#allocation3], %s133
        %s135 = sand.u32 %s71, 1
        %s136 = smul.addr %s135, 64
        %s137 = scalar_lea.vmem [#allocation2], %s136
        %s138 = smul.u32 8, %s16
        %p139 = scmp.lt.s32.totalorder %s138, 15
        %s140 = scalar_select %p139, %s138, 15
        %s141 = smul.addr %s140, 4
        %s142 = scalar_lea.vmem %s0, %s141
        %s143 = smul.u32 8, %s16
        %s144 = smul.u32 8, %s16
        %v146 = vld [vmem:[%s142] sm:$0xf]
        %v147 = vld [vmem:[%s142 + $0x4] sm:$0xf]
        %v148 = vld [vmem:[%s142 + $0x8] sm:$0xf]
        %v149 = vld [vmem:[%s142 + $0xc] sm:$0xf]
        %v150 = vld [vmem:[%s142 + $0x10] sm:$0xf]
        %v151 = vld [vmem:[%s142 + $0x14] sm:$0xf]
        %v152 = vld [vmem:[%s142 + $0x18] sm:$0xf]
        %v153 = vld [vmem:[%s142 + $0x1c] sm:$0xf]
        %v154 = vld [vmem:[%s1] sm:$0xf]
        %v155 = vld [vmem:[%s1 + $0x4] sm:$0x7]
        %v164 = vunpack.c.l.b16 %v146
        %v165 = vunpack.c.l.b16 %v147
        %v166 = vunpack.c.l.b16 %v148
        %v167 = vunpack.c.l.b16 %v149
        %v168 = vunpack.c.l.b16 %v150
        %v169 = vunpack.c.l.b16 %v151
        %v170 = vunpack.c.l.b16 %v152
        %v171 = vunpack.c.l.b16 %v153
        %v172 = vpack.c.b16 %v165, %v164
        %v173 = vpack.c.b16 %v167, %v166
        %v174 = vpack.c.b16 %v169, %v168
        %v175 = vpack.c.b16 %v171, %v170
        %v178 = vunpack.c.l.b16 %v154
        %v179 = vunpack.c.l.b16 %v155
        %v180 = vpack.c.b16 %v179, %v178
        %vm181 = vcmask 113664
        %v183 = vsel %vm181, %v172, 0
        %v186 = vsel %vm181, %v173, 0
        %v189 = vsel %vm181, %v174, 0
        %v192 = vsel %vm181, %v175, 0
        %vm194 = vcmask 1046528
        %v196 = vsel %vm194, %v180, 0
        %198 = vmatprep.subr.bf16.mxu0 0
        %199 = vmatpush1.bf16.msra.mxu0 0
        %200 = vmatprep.subr.bf16.mxu0 0
        %201 = vmatpush1.bf16.msra.mxu0 0
        %202 = vmatprep.subr.bf16.mxu0 0
        %203 = vmatpush1.bf16.msra.mxu0 0
        %204 = vmatprep.subr.bf16.mxu0 0
        %205 = vmatpush1.bf16.msra.mxu0 0
        %206 = vmatprep.subr.bf16.mxu0 0
        %207 = vmatpush1.bf16.msra.mxu0 0
        %208 = vmatprep.subr.bf16.mxu0 0
        %209 = vmatpush1.bf16.msra.mxu0 0
        %210 = vmatprep.subr.bf16.mxu0 0
        %211 = vmatpush1.bf16.msra.mxu0 0
        %212 = vmatprep.subr.bf16.mxu0 0
        %213 = vmatpush1.bf16.msra.mxu0 %v196
        %214 = vmatprep.subr.bf16.mxu0 0
        %215 = vmatpush2.bf16.msra.mxu0 0
        %216 = vmatprep.subr.bf16.mxu0 0
        %217 = vmatpush2.bf16.msra.mxu0 0
        %218 = vmatprep.subr.bf16.mxu0 0
        %219 = vmatpush2.bf16.msra.mxu0 0
        %220 = vmatprep.subr.bf16.mxu0 0
        %221 = vmatpush2.bf16.msra.mxu0 0
        %222 = vmatprep.subr.bf16.mxu0 0
        %223 = vmatpush2.bf16.msra.mxu0 0
        %224 = vmatprep.subr.bf16.mxu0 0
        %225 = vmatpush2.bf16.msra.mxu0 0
        %226 = vmatprep.subr.bf16.mxu0 0
        %227 = vmatpush2.bf16.msra.mxu0 0
        %228 = vmatprep.subr.bf16.mxu0 0
        %229 = vmatpush2.bf16.msra.mxu0 0
        %230 = vmatprep.mubr.bf16.mxu0 0
        %231 = vmatmul.mubr.bf16.gmra.mxu0 %v183
        %v232 = vpop.f32.mrf.mxu0
        %v233 = vadd.f32 0.0, %v232
        %v234 = vpop.f32.mrf.mxu0
        %v235 = vpop.f32.mrf.mxu0
        %v236 = vadd.f32 0.0, %v235
        %v237 = vpop.f32.mrf.mxu0
        %238 = vmatprep.mubr.bf16.mxu0 0
        %239 = vmatmul.mubr.bf16.gmra.mxu0 %v186
        %v240 = vpop.f32.mrf.mxu0
        %v241 = vadd.f32 0.0, %v240
        %v242 = vpop.f32.mrf.mxu0
        %v243 = vpop.f32.mrf.mxu0
        %v244 = vadd.f32 0.0, %v243
        %v245 = vpop.f32.mrf.mxu0
        %246 = vmatprep.mubr.bf16.mxu0 0
        %247 = vmatmul.mubr.bf16.gmra.mxu0 %v189
        %v248 = vpop.f32.mrf.mxu0
        %v249 = vadd.f32 0.0, %v248
        %v250 = vpop.f32.mrf.mxu0
        %v251 = vpop.f32.mrf.mxu0
        %v252 = vadd.f32 0.0, %v251
        %v253 = vpop.f32.mrf.mxu0
        %254 = vmatprep.mubr.bf16.mxu0 0
        %255 = vmatmul.mubr.bf16.gmra.mxu0 %v192
        %v256 = vpop.f32.mrf.mxu0
        %v257 = vadd.f32 0.0, %v256
        %v258 = vpop.f32.mrf.mxu0
        %v259 = vpop.f32.mrf.mxu0
        %v260 = vadd.f32 0.0, %v259
        %v261 = vpop.f32.mrf.mxu0
        %262 = vdwg.mxu0
        %263 = vst [vmem:[%s137] sm:$0xff] %v233
        %264 = vst [vmem:[%s137 + $0x8] sm:$0xff] %v236
        %265 = vst [vmem:[%s137 + $0x10] sm:$0xff] %v241
        %266 = vst [vmem:[%s137 + $0x18] sm:$0xff] %v244
        %267 = vst [vmem:[%s137 + $0x20] sm:$0xff] %v249
        %268 = vst [vmem:[%s137 + $0x28] sm:$0xff] %v252
        %269 = vst [vmem:[%s137 + $0x30] sm:$0xff] %v257
        %270 = vst [vmem:[%s137 + $0x38] sm:$0xff] %v260
        %s271 = sand.u32 %s71, 1
        %s272 = scalar_lea.sflag [#allocation3], %s271
        %s273 = sand.u32 %s71, 1
        %s274 = smul.addr %s273, 64
        %s275 = scalar_lea.vmem [#allocation2], %s274
        // Predicated region
        $region29: #{location_layer_forward.1} parent=27 // pred_check
          %p276 = pneg %p81
        $region30: #{location_layer_forward.1} parent=27 // pred_check_branch
          %278 = sbr.rel (%p276) target = $region32
        $region31: #{location_layer_forward.1} parent=27 // pred_region
          %s279 = smul.u32 8, %s16
          %s281 = ssub.s32 1024, 1024
          %282 = vsyncadd %s272, %s281
          %s283 = smul.addr %s279, 128
          %s284 = scalar_lea.hbm %s2, %s283
          %s285 = sshll.u32 %s275, 4
          %s286 = int_to_ptr.vmem [resolvable:$true] %s285
          %291 = dma.vmem_to_hbm [thread:$0]  %s286, 1024, %s284, %s272, 128, 128, 8
        $region32: #{location_layer_forward.1} parent=27 // pred_fallthru
          _
      $region28: #{location_layer_forward.1} parent=5 // pred_fallthru
        _
      %p292 = scmp.le.s32.totalorder 2, %s11
      // Predicated region
      $region33: #{location_layer_forward.1} parent=5 // pred_check
        %p293 = pneg %p292
      $region34: #{location_layer_forward.1} parent=5 // pred_check_branch
        %295 = sbr.rel (%p293) target = $region36
      $region35: #{location_layer_forward.1} parent=5 // pred_region
        %s296 = ssub.s32 %s11, 2
        // Predicated region
        $region37: #{location_layer_forward.1} parent=35 // pred_check
          %p297 = pneg %p87
        $region38: #{location_layer_forward.1} parent=35 // pred_check_branch
          %299 = sbr.rel (%p297) target = $region40
        $region39: #{location_layer_forward.1} parent=35 // pred_region
          %s300 = sand.u32 %s72, 1
          %s301 = scalar_lea.sflag [#allocation3], %s300
          %s302 = sand.u32 %s72, 1
          %s303 = smul.addr %s302, 64
          %s304 = scalar_lea.vmem [#allocation2], %s303
          %305 = dma.done %s301, 1024
        $region40: #{location_layer_forward.1} parent=35 // pred_fallthru
          _
      $region36: #{location_layer_forward.1} parent=5 // pred_fallthru
        _
    $region6: #{location_layer_forward.1} parent=1 // loop_footer
      %s15 = sadd.s32 1, %s11
    $region7: #{location_layer_forward.1} parent=1 // loop_footer_branch
      %10 = sbr.rel target = $region3
    $region8: #{location_layer_forward.1} parent=1 // loop_exit
      _
    %306 = vsyncpa [#allocation3], 1
    %s307 = scalar_lea.sflag [#allocation3], 1
    %308 = vsyncpa %s307, 1

</llo_original>
